<compile_context>
chip_gen: v6e
topology: v6e:2x2x1
jax: 0.10.0
libtpu: 0.0.40
codegen_flags: <defaults>
</compile_context>

<pallas_src>
import functools
import math

import jax
import jax.numpy as jnp
import numpy as np
from jax.experimental import pallas as pl
from jax.experimental.pallas import tpu as pltpu


# --------------------------- fused Pallas kernel ---------------------------

def _fused_frontend_kernel(x_ref, w1_ref, w2_ref, pe_ref, o_ref, h_ref, *,
                           k1, s1, k2, s2, t1, t2, c_in, c1):
    """One batch row:
         conv1 (BN1 scale folded into W1)          -> VMEM scratch h
         conv2 (BN2 scale * sqrt(d) folded into W2) -> + (PE + all folded shifts)

    x_ref : (T, C_in)      input row (f32 or bf16, matches compute dtype)
    w1_ref: (K1*C_in, C1)  folded conv1 weights
    w2_ref: (K2*C1, C2)    folded conv2 weights
    pe_ref: (T2, C2)       f32 positional encoding + all additive shifts
    o_ref : (T2, C2)       f32 output row
    h_ref : (T1, C1)       f32 VMEM scratch (bias-free conv1 output)
    """
    wdt1 = w1_ref.dtype
    wdt2 = w2_ref.dtype

    # ---- conv1: K1 shifted strided reads, accumulated on the MXU ----
    acc1 = None
    for k in range(k1):
        xk = x_ref[pl.ds(k, t1, stride=s1), :].astype(wdt1)
        part = jnp.dot(xk, w1_ref[k * c_in:(k + 1) * c_in, :],
                       preferred_element_type=jnp.float32)
        acc1 = part if acc1 is None else acc1 + part
    h_ref[...] = acc1

    # ---- conv2: reads the VMEM-resident conv1 output (no HBM round-trip) ----
    acc2 = pe_ref[...].astype(jnp.float32)          # PE + all folded shifts
    for k in range(k2):
        hk = h_ref[pl.ds(k, t2, stride=s2), :].astype(wdt2)
        acc2 = acc2 + jnp.dot(hk, w2_ref[k * c1:(k + 1) * c1, :],
                              preferred_element_type=jnp.float32)
    o_ref[...] = acc2.astype(o_ref.dtype)


# ------------------- host-side parameter folding / glue --------------------

def _fold_params(params, cfg, compute_dtype, eps=1e-5):
    """Fold conv biases, BN (inference) scale/shift and sqrt(d_model) into the
    matmul weights plus a single additive per-channel shift (all in f32)."""
    c_in, c1, c2 = cfg["in_features"], cfg["conv1_channels"], cfg["conv2_channels"]
    k1, k2 = cfg["conv1_kernel_size"], cfg["conv2_kernel_size"]
    xscale = math.sqrt(c2)

    sc1 = params["bn1_gamma"] / jnp.sqrt(params["bn1_var"] + eps)
    sh1 = params["bn1_beta"] - params["bn1_mean"] * sc1
    sc2 = params["bn2_gamma"] / jnp.sqrt(params["bn2_var"] + eps)
    sh2 = params["bn2_beta"] - params["bn2_mean"] * sc2

    # PyTorch Conv1d weight layout [C_out, C_in, K] -> matmul layout [K*C_in, C_out]
    w1f = jnp.transpose(params["conv1_w"], (2, 1, 0)).reshape(k1 * c_in, c1)
    w2f = jnp.transpose(params["conv2_w"], (2, 1, 0)).reshape(k2 * c1, c2)
    w1f = w1f * sc1[None, :]                    # fold BN1 scale
    w2f = w2f * (sc2 * xscale)[None, :]         # fold BN2 scale + sqrt(d_model)

    # conv1 bias + BN1 shift pushed through the (linear, VALID) conv2 into one
    # per-output-channel shift, added together with conv2 bias + BN2 shift.
    d1 = params["conv1_b"] * sc1 + sh1                              # [C1]
    w2sum = w2f.reshape(k2, c1, c2).sum(axis=0)                     # [C1, C2]
    shift = d1 @ w2sum + xscale * (params["conv2_b"] * sc2 + sh2)   # [C2]
    return w1f.astype(compute_dtype), w2f.astype(compute_dtype), shift


@functools.lru_cache(maxsize=None)
def _pe_table(t, d_model):
    # Computed once per (t, d_model) with numpy -> baked-in constant; no
    # per-forward sin/cos work (especially relevant on v5e).
    pos = np.arange(t, dtype=np.float32)[:, None]
    div = np.exp(np.arange(0, d_model, 2, dtype=np.float32)
                 * -(math.log(10000.0) / d_model))
    pe = np.zeros((t, d_model), np.float32)
    pe[:, 0::2] = np.sin(pos * div)
    pe[:, 1::2] = np.cos(pos * div)
    return pe


def _mask_pool(seq_mask, kernel_size, stride, padding):
    # equivalent of F.max_pool1d on the boolean sequence mask (padding is 0 here)
    assert padding == 0
    B, T = seq_mask.shape
    t_out = (T - kernel_size) // stride + 1
    idx = stride * jnp.arange(t_out)[:, None] + jnp.arange(kernel_size)[None, :]
    m = seq_mask.astype(jnp.float32)[:, idx]           # [B, T_out, K]
    return jnp.max(m, axis=-1) > 0.0


def two_layer_1d_frontend(params, tensor, sequence_mask, cfg,
                          compute_dtype=jnp.float32):
    """tensor: [B, T, F] f32, sequence_mask: [B, T] bool -> ([B, T'', C2], [B, T''])."""
    B, T, c_in = tensor.shape
    assert c_in == cfg["in_features"]
    c1, c2 = cfg["conv1_channels"], cfg["conv2_channels"]
    k1, s1 = cfg["conv1_kernel_size"], cfg["conv1_stride"]
    k2, s2 = cfg["conv2_kernel_size"], cfg["conv2_stride"]
    t1 = (T - k1) // s1 + 1
    t2 = (t1 - k2) // s2 + 1

    w1f, w2f, shift = _fold_params(params, cfg, compute_dtype)
    pe = jnp.asarray(_pe_table(t2, c2)) + shift[None, :]     # [T2, C2] f32

    kernel = functools.partial(_fused_frontend_kernel,
                               k1=k1, s1=s1, k2=k2, s2=s2,
                               t1=t1, t2=t2, c_in=c_in, c1=c1)

    # Cast the input on the host for the low-precision path: halves the input
    # HBM DMA bytes and makes the in-kernel casts no-ops.  (f32 path unchanged.)
    x_in = tensor.astype(compute_dtype)
    itemsize = jnp.dtype(compute_dtype).itemsize

    flops = 2 * B * (t1 * k1 * c_in * c1 + t2 * k2 * c1 * c2)
    bytes_accessed = (itemsize * B * T * c_in
                      + 4 * (B * t2 * c2 + t2 * c2)
                      + w1f.size * w1f.dtype.itemsize
                      + w2f.size * w2f.dtype.itemsize)

    out = pl.pallas_call(
        kernel,
        out_shape=jax.ShapeDtypeStruct((B, t2, c2), jnp.float32),
        grid=(B,),
        in_specs=[
            pl.BlockSpec((None, T, c_in), lambda b: (b, 0, 0)),   # input row
            pl.BlockSpec((k1 * c_in, c1), lambda b: (0, 0)),      # W1 (VMEM resident)
            pl.BlockSpec((k2 * c1, c2), lambda b: (0, 0)),        # W2 (VMEM resident)
            pl.BlockSpec((t2, c2), lambda b: (0, 0)),             # PE + folded shifts
        ],
        out_specs=pl.BlockSpec((None, t2, c2), lambda b: (b, 0, 0)),
        scratch_shapes=[pltpu.VMEM((t1, c1), jnp.float32)],
        compiler_params=pltpu.CompilerParams(
            dimension_semantics=("parallel",)),
        cost_estimate=pl.CostEstimate(flops=int(flops), transcendentals=0,
                                      bytes_accessed=int(bytes_accessed)),
    )(x_in, w1f, w2f, pe)

    mask = _mask_pool(sequence_mask, k1, s1, 0)
    mask = _mask_pool(mask, k2, s2, 0)
    # TODO(synk): Dropout(p=0.1) after the positional encoding and training-mode
    # BatchNorm batch statistics are not modeled (eval/inference semantics only).
    return out, mask


# ---------------- pure-JAX reference for verification ----------------

def _reference(params, tensor, sequence_mask, cfg):
    def conv1d(x_btc, w, b, stride):
        y = jax.lax.conv_general_dilated(
            x_btc, jnp.transpose(w, (2, 1, 0)),  # [K, C_in, C_out]
            window_strides=(stride,), padding="VALID",
            dimension_numbers=("NWC", "WIO", "NWC"),
            precision=jax.lax.Precision.HIGHEST)
        return y + b[None, None, :]

    def bn(x, gamma, beta, mean, var, eps=1e-5):
        return (x - mean) / jnp.sqrt(var + eps) * gamma + beta

    h = conv1d(tensor, params["conv1_w"], params["conv1_b"], cfg["conv1_stride"])
    h = bn(h, params["bn1_gamma"], params["bn1_beta"], params["bn1_mean"], params["bn1_var"])
    h = conv1d(h, params["conv2_w"], params["conv2_b"], cfg["conv2_stride"])
    h = bn(h, params["bn2_gamma"], params["bn2_beta"], params["bn2_mean"], params["bn2_var"])
    pe = jnp.asarray(_pe_table(h.shape[1], cfg["conv2_channels"]))
    h = h * math.sqrt(cfg["conv2_channels"]) + pe[None]
    m = _mask_pool(sequence_mask, cfg["conv1_kernel_size"], cfg["conv1_stride"], 0)
    m = _mask_pool(m, cfg["conv2_kernel_size"], cfg["conv2_stride"], 0)
    return h, m


if __name__ == "__main__":
    # NOTE: the PyTorch module constructs bn2 with conv1_channels features but applies
    # it to conv2's output, so its forward only runs when conv1_channels == conv2_channels
    # (true for the real 512/512 config; scaled down to 128/128 here, kernel/stride kept).
    cfg = dict(in_features=16, conv1_channels=128, conv2_channels=128,
               conv1_kernel_size=5, conv1_stride=3,
               conv2_kernel_size=5, conv2_stride=2)
    B, T = 2, 64

    key = jax.random.PRNGKey(0)
    ks = jax.random.split(key, 12)
    c1, c2, ci = cfg["conv1_channels"], cfg["conv2_channels"], cfg["in_features"]
    params = {
        "conv1_w": 0.1 * jax.random.normal(ks[0], (c1, ci, cfg["conv1_kernel_size"]), jnp.float32),
        "conv1_b": 0.1 * jax.random.normal(ks[1], (c1,), jnp.float32),
        "conv2_w": 0.1 * jax.random.normal(ks[2], (c2, c1, cfg["conv2_kernel_size"]), jnp.float32),
        "conv2_b": 0.1 * jax.random.normal(ks[3], (c2,), jnp.float32),
        "bn1_gamma": 1.0 + 0.1 * jax.random.normal(ks[4], (c1,), jnp.float32),
        "bn1_beta": 0.1 * jax.random.normal(ks[5], (c1,), jnp.float32),
        "bn1_mean": 0.1 * jax.random.normal(ks[6], (c1,), jnp.float32),
        "bn1_var": 0.5 + jax.random.uniform(ks[7], (c1,), jnp.float32),
        "bn2_gamma": 1.0 + 0.1 * jax.random.normal(ks[8], (c2,), jnp.float32),
        "bn2_beta": 0.1 * jax.random.normal(ks[9], (c2,), jnp.float32),
        "bn2_mean": 0.1 * jax.random.normal(ks[10], (c2,), jnp.float32),
        "bn2_var": 0.5 + jax.random.uniform(ks[11], (c2,), jnp.float32),
    }

    x = jax.random.normal(jax.random.PRNGKey(1), (B, T, ci), jnp.float32)
    lengths = jnp.array([T, 45], dtype=jnp.int32)
    sequence_mask = jnp.arange(T)[None, :] < lengths[:, None]

    # f32 path (tight check against the pure-JAX reference).
    out, out_mask = two_layer_1d_frontend(params, x, sequence_mask, cfg)
    out = jax.block_until_ready(out)
    out_mask = jax.block_until_ready(out_mask)

    ref_out, ref_mask = _reference(params, x, sequence_mask, cfg)
    assert out.shape == ref_out.shape and out_mask.shape == ref_mask.shape
    assert jnp.allclose(out, ref_out, rtol=2e-4, atol=2e-4), \
        float(jnp.max(jnp.abs(out - ref_out)))
    assert bool(jnp.all(out_mask == ref_mask))

    # bf16-weight/bf16-input MXU path (v6e/v7x); f32 accumulation, loose check.
    out_bf16, _ = two_layer_1d_frontend(params, x, sequence_mask, cfg,
                                        compute_dtype=jnp.bfloat16)
    out_bf16 = jax.block_until_ready(out_bf16)
    rel = float(jnp.linalg.norm(out_bf16 - ref_out) / jnp.linalg.norm(ref_out))
    assert rel < 3e-2, rel

    print("KERNEL_OK")
</pallas_src>

<mosaic_0001>
module attributes {stable_mosaic.version = 11 : i64} {
  func.func @_fused_frontend_kernel(%arg0: i32, %arg1: memref<1x64x16xf32, #tpu.memory_space<vmem>>, %arg2: memref<80x128xf32, #tpu.memory_space<vmem>>, %arg3: memref<640x128xf32, #tpu.memory_space<vmem>>, %arg4: memref<8x128xf32, #tpu.memory_space<vmem>>, %arg5: memref<1x8x128xf32, #tpu.memory_space<vmem>>, %arg6: memref<20x128xf32, #tpu.memory_space<vmem>>) attributes {dimension_semantics = [#tpu.dimension_semantics<parallel>], iteration_bounds = array<i64: 2>, scalar_prefetch = 0 : i64, scratch_operands = 1 : i64, tpu.core_type = #tpu.core_type<tc>, window_params = [{transform_indices = @transform_0, window_bounds = array<i64: 1, 64, 16>}, {pipeline_mode = #tpu.pipeline_mode<synchronous>, transform_indices = @transform_1, window_bounds = array<i64: 80, 128>}, {pipeline_mode = #tpu.pipeline_mode<synchronous>, transform_indices = @transform_2, window_bounds = array<i64: 640, 128>}, {pipeline_mode = #tpu.pipeline_mode<synchronous>, transform_indices = @transform_3, window_bounds = array<i64: 8, 128>}, {transform_indices = @transform_4, window_bounds = array<i64: 1, 8, 128>}]} {
    %c0 = arith.constant 0 : index
    %c0_0 = arith.constant 0 : index
    %c0_1 = arith.constant 0 : index
    %0 = tpu.strided_load %arg1[%c0, %c0_0, %c0_1] {strides = array<i32: 1, 3, 1>} : memref<1x64x16xf32, #tpu.memory_space<vmem>>, vector<1x20x16xf32>
    %1 = vector.shape_cast %0 : vector<1x20x16xf32> to vector<20x16xf32>
    %c0_2 = arith.constant 0 : index
    %c0_3 = arith.constant 0 : index
    %2 = vector.load %arg2[%c0_2, %c0_3] : memref<80x128xf32, #tpu.memory_space<vmem>>, vector<16x128xf32>
    %cst = arith.constant dense<0.000000e+00> : vector<20x128xf32>
    %3 = tpu.matmul %1, %2, %cst {dimension_numbers = #tpu.dot_dimension_numbers<[1], [0], [0], [1], [0, 0, 1, 1], [], []>} : vector<20x16xf32>, vector<16x128xf32>, vector<20x128xf32> -> vector<20x128xf32>
    %c0_4 = arith.constant 0 : index
    %c1 = arith.constant 1 : index
    %c0_5 = arith.constant 0 : index
    %4 = tpu.strided_load %arg1[%c0_4, %c1, %c0_5] {strides = array<i32: 1, 3, 1>} : memref<1x64x16xf32, #tpu.memory_space<vmem>>, vector<1x20x16xf32>
    %5 = vector.shape_cast %4 : vector<1x20x16xf32> to vector<20x16xf32>
    %c16 = arith.constant 16 : index
    %c0_6 = arith.constant 0 : index
    %6 = vector.load %arg2[%c16, %c0_6] : memref<80x128xf32, #tpu.memory_space<vmem>>, vector<16x128xf32>
    %cst_7 = arith.constant dense<0.000000e+00> : vector<20x128xf32>
    %7 = tpu.matmul %5, %6, %cst_7 {dimension_numbers = #tpu.dot_dimension_numbers<[1], [0], [0], [1], [0, 0, 1, 1], [], []>} : vector<20x16xf32>, vector<16x128xf32>, vector<20x128xf32> -> vector<20x128xf32>
    %8 = arith.addf %3, %7 : vector<20x128xf32>
    %c0_8 = arith.constant 0 : index
    %c2 = arith.constant 2 : index
    %c0_9 = arith.constant 0 : index
    %9 = tpu.strided_load %arg1[%c0_8, %c2, %c0_9] {strides = array<i32: 1, 3, 1>} : memref<1x64x16xf32, #tpu.memory_space<vmem>>, vector<1x20x16xf32>
    %10 = vector.shape_cast %9 : vector<1x20x16xf32> to vector<20x16xf32>
    %c32 = arith.constant 32 : index
    %c0_10 = arith.constant 0 : index
    %11 = vector.load %arg2[%c32, %c0_10] : memref<80x128xf32, #tpu.memory_space<vmem>>, vector<16x128xf32>
    %cst_11 = arith.constant dense<0.000000e+00> : vector<20x128xf32>
    %12 = tpu.matmul %10, %11, %cst_11 {dimension_numbers = #tpu.dot_dimension_numbers<[1], [0], [0], [1], [0, 0, 1, 1], [], []>} : vector<20x16xf32>, vector<16x128xf32>, vector<20x128xf32> -> vector<20x128xf32>
    %13 = arith.addf %8, %12 : vector<20x128xf32>
    %c0_12 = arith.constant 0 : index
    %c3 = arith.constant 3 : index
    %c0_13 = arith.constant 0 : index
    %14 = tpu.strided_load %arg1[%c0_12, %c3, %c0_13] {strides = array<i32: 1, 3, 1>} : memref<1x64x16xf32, #tpu.memory_space<vmem>>, vector<1x20x16xf32>
    %15 = vector.shape_cast %14 : vector<1x20x16xf32> to vector<20x16xf32>
    %c48 = arith.constant 48 : index
    %c0_14 = arith.constant 0 : index
    %16 = vector.load %arg2[%c48, %c0_14] : memref<80x128xf32, #tpu.memory_space<vmem>>, vector<16x128xf32>
    %cst_15 = arith.constant dense<0.000000e+00> : vector<20x128xf32>
    %17 = tpu.matmul %15, %16, %cst_15 {dimension_numbers = #tpu.dot_dimension_numbers<[1], [0], [0], [1], [0, 0, 1, 1], [], []>} : vector<20x16xf32>, vector<16x128xf32>, vector<20x128xf32> -> vector<20x128xf32>
    %18 = arith.addf %13, %17 : vector<20x128xf32>
    %c0_16 = arith.constant 0 : index
    %c4 = arith.constant 4 : index
    %c0_17 = arith.constant 0 : index
    %19 = tpu.strided_load %arg1[%c0_16, %c4, %c0_17] {strides = array<i32: 1, 3, 1>} : memref<1x64x16xf32, #tpu.memory_space<vmem>>, vector<1x20x16xf32>
    %20 = vector.shape_cast %19 : vector<1x20x16xf32> to vector<20x16xf32>
    %c64 = arith.constant 64 : index
    %c0_18 = arith.constant 0 : index
    %21 = vector.load %arg2[%c64, %c0_18] : memref<80x128xf32, #tpu.memory_space<vmem>>, vector<16x128xf32>
    %cst_19 = arith.constant dense<0.000000e+00> : vector<20x128xf32>
    %22 = tpu.matmul %20, %21, %cst_19 {dimension_numbers = #tpu.dot_dimension_numbers<[1], [0], [0], [1], [0, 0, 1, 1], [], []>} : vector<20x16xf32>, vector<16x128xf32>, vector<20x128xf32> -> vector<20x128xf32>
    %23 = arith.addf %18, %22 : vector<20x128xf32>
    %c0_20 = arith.constant 0 : index
    %c0_21 = arith.constant 0 : index
    %24 = vector.load %arg6[%c0_20, %c0_21] : memref<20x128xf32, #tpu.memory_space<vmem>>, vector<20x128xf32>
    tpu.vector_store %arg6[%c0_20, %c0_21], %23 {strides = array<i32>} : memref<20x128xf32, #tpu.memory_space<vmem>>, vector<20x128xf32>,
    %c0_22 = arith.constant 0 : index
    %c0_23 = arith.constant 0 : index
    %25 = vector.load %arg4[%c0_22, %c0_23] : memref<8x128xf32, #tpu.memory_space<vmem>>, vector<8x128xf32>
    %c0_24 = arith.constant 0 : index
    %c0_25 = arith.constant 0 : index
    %26 = tpu.strided_load %arg6[%c0_24, %c0_25] {strides = array<i32: 2, 1>} : memref<20x128xf32, #tpu.memory_space<vmem>>, vector<8x128xf32>
    %c0_26 = arith.constant 0 : index
    %c0_27 = arith.constant 0 : index
    %27 = vector.load %arg3[%c0_26, %c0_27] : memref<640x128xf32, #tpu.memory_space<vmem>>, vector<128x128xf32>
    %cst_28 = arith.constant dense<0.000000e+00> : vector<8x128xf32>
    %28 = tpu.matmul %26, %27, %cst_28 {dimension_numbers = #tpu.dot_dimension_numbers<[1], [0], [0], [1], [0, 0, 1, 1], [], []>} : vector<8x128xf32>, vector<128x128xf32>, vector<8x128xf32> -> vector<8x128xf32>
    %29 = arith.addf %25, %28 : vector<8x128xf32>
    %c1_29 = arith.constant 1 : index
    %c0_30 = arith.constant 0 : index
    %30 = tpu.strided_load %arg6[%c1_29, %c0_30] {strides = array<i32: 2, 1>} : memref<20x128xf32, #tpu.memory_space<vmem>>, vector<8x128xf32>
    %c128 = arith.constant 128 : index
    %c0_31 = arith.constant 0 : index
    %31 = vector.load %arg3[%c128, %c0_31] : memref<640x128xf32, #tpu.memory_space<vmem>>, vector<128x128xf32>
    %cst_32 = arith.constant dense<0.000000e+00> : vector<8x128xf32>
    %32 = tpu.matmul %30, %31, %cst_32 {dimension_numbers = #tpu.dot_dimension_numbers<[1], [0], [0], [1], [0, 0, 1, 1], [], []>} : vector<8x128xf32>, vector<128x128xf32>, vector<8x128xf32> -> vector<8x128xf32>
    %33 = arith.addf %29, %32 : vector<8x128xf32>
    %c2_33 = arith.constant 2 : index
    %c0_34 = arith.constant 0 : index
    %34 = tpu.strided_load %arg6[%c2_33, %c0_34] {strides = array<i32: 2, 1>} : memref<20x128xf32, #tpu.memory_space<vmem>>, vector<8x128xf32>
    %c256 = arith.constant 256 : index
    %c0_35 = arith.constant 0 : index
    %35 = vector.load %arg3[%c256, %c0_35] : memref<640x128xf32, #tpu.memory_space<vmem>>, vector<128x128xf32>
    %cst_36 = arith.constant dense<0.000000e+00> : vector<8x128xf32>
    %36 = tpu.matmul %34, %35, %cst_36 {dimension_numbers = #tpu.dot_dimension_numbers<[1], [0], [0], [1], [0, 0, 1, 1], [], []>} : vector<8x128xf32>, vector<128x128xf32>, vector<8x128xf32> -> vector<8x128xf32>
    %37 = arith.addf %33, %36 : vector<8x128xf32>
    %c3_37 = arith.constant 3 : index
    %c0_38 = arith.constant 0 : index
    %38 = tpu.strided_load %arg6[%c3_37, %c0_38] {strides = array<i32: 2, 1>} : memref<20x128xf32, #tpu.memory_space<vmem>>, vector<8x128xf32>
    %c384 = arith.constant 384 : index
    %c0_39 = arith.constant 0 : index
    %39 = vector.load %arg3[%c384, %c0_39] : memref<640x128xf32, #tpu.memory_space<vmem>>, vector<128x128xf32>
    %cst_40 = arith.constant dense<0.000000e+00> : vector<8x128xf32>
    %40 = tpu.matmul %38, %39, %cst_40 {dimension_numbers = #tpu.dot_dimension_numbers<[1], [0], [0], [1], [0, 0, 1, 1], [], []>} : vector<8x128xf32>, vector<128x128xf32>, vector<8x128xf32> -> vector<8x128xf32>
    %41 = arith.addf %37, %40 : vector<8x128xf32>
    %c4_41 = arith.constant 4 : index
    %c0_42 = arith.constant 0 : index
    %42 = tpu.strided_load %arg6[%c4_41, %c0_42] {strides = array<i32: 2, 1>} : memref<20x128xf32, #tpu.memory_space<vmem>>, vector<8x128xf32>
    %c512 = arith.constant 512 : index
    %c0_43 = arith.constant 0 : index
    %43 = vector.load %arg3[%c512, %c0_43] : memref<640x128xf32, #tpu.memory_space<vmem>>, vector<128x128xf32>
    %cst_44 = arith.constant dense<0.000000e+00> : vector<8x128xf32>
    %44 = tpu.matmul %42, %43, %cst_44 {dimension_numbers = #tpu.dot_dimension_numbers<[1], [0], [0], [1], [0, 0, 1, 1], [], []>} : vector<8x128xf32>, vector<128x128xf32>, vector<8x128xf32> -> vector<8x128xf32>
    %45 = arith.addf %41, %44 : vector<8x128xf32>
    %c0_45 = arith.constant 0 : index
    %c0_46 = arith.constant 0 : index
    %c0_47 = arith.constant 0 : index
    %46 = vector.load %arg5[%c0_45, %c0_46, %c0_47] : memref<1x8x128xf32, #tpu.memory_space<vmem>>, vector<1x8x128xf32>
    %47 = vector.shape_cast %46 : vector<1x8x128xf32> to vector<8x128xf32>
    %48 = vector.shape_cast %45 : vector<8x128xf32> to vector<1x8x128xf32>
    tpu.vector_store %arg5[%c0_45, %c0_46, %c0_47], %48 {strides = array<i32>} : memref<1x8x128xf32, #tpu.memory_space<vmem>>, vector<1x8x128xf32>,
    return
  }
  func.func @transform_0(%arg0: i32) -> (i32, i32, i32) {
    %c0_i32 = arith.constant 0 : i32
    %c0_i32_0 = arith.constant 0 : i32
    %c0_i32_1 = arith.constant 0 : i32
    return %arg0, %c0_i32, %c0_i32_0 : i32, i32, i32
  }
  func.func @transform_1(%arg0: i32) -> (i32, i32) {
    %c0_i32 = arith.constant 0 : i32
    %c0_i32_0 = arith.constant 0 : i32
    %c0_i32_1 = arith.constant 0 : i32
    return %c0_i32, %c0_i32_0 : i32, i32
  }
  func.func @transform_2(%arg0: i32) -> (i32, i32) {
    %c0_i32 = arith.constant 0 : i32
    %c0_i32_0 = arith.constant 0 : i32
    %c0_i32_1 = arith.constant 0 : i32
    return %c0_i32, %c0_i32_0 : i32, i32
  }
  func.func @transform_3(%arg0: i32) -> (i32, i32) {
    %c0_i32 = arith.constant 0 : i32
    %c0_i32_0 = arith.constant 0 : i32
    %c0_i32_1 = arith.constant 0 : i32
    return %c0_i32, %c0_i32_0 : i32, i32
  }
  func.func @transform_4(%arg0: i32) -> (i32, i32, i32) {
    %c0_i32 = arith.constant 0 : i32
    %c0_i32_0 = arith.constant 0 : i32
    %c0_i32_1 = arith.constant 0 : i32
    return %arg0, %c0_i32, %c0_i32_0 : i32, i32, i32
  }
}

</mosaic_0001>

<llo_original>
// kernel: tpu_custom_call.1
$region0: #{tpu_custom_call.1}
  #allocation0 [shape = 'u32[]', space=smem, size = 0x4, offset = 0x4, fixed_abs, tag = 'smem constant byte address 0x4 - core index']
  #allocation1 [shape = 'u32[144,128]{1,0:T(1,128)}', space=vmem, size = 0x12000, scoped, tag = 'internal scratch']
  #allocation2 [shape = 'f32[20,128]{1,0:T(8,128)}', space=vmem, size = 0x3000, scoped, tag = 'scratch operand']
  %s0 = inlined_call_operand.vmem [shape: f32[2,64,16], index: 0, kind: input, shape index: {}]
  %s1 = inlined_call_operand.vmem [shape: f32[80,128], index: 1, kind: input, shape index: {}]
  %s2 = inlined_call_operand.hbm [shape: f32[640,128], index: 2, kind: input, shape index: {}]
  %s3 = inlined_call_operand.vmem [shape: f32[8,128], index: 3, kind: input, shape index: {}]
  %s4 = inlined_call_operand.hbm [shape: f32[2,8,128], index: 4, kind: output, shape index: {}]
  %s5 = sld [smem:[#allocation0]]
  $region53: #{tpu_custom_call.1} parent=0
    _
  %s7 = ssub.s32 1, %s5
  %s8 = scalar_select 0, %s7, %s5
  $region1: #{tpu_custom_call.1} parent=0
    #allocation3 [shape = 'u8[327680]{0}', space=vmem, size = 0x50000, scoped, tag = 'input window, operand 2, single buffered']
    #allocation4 [shape = 's32[2]{0}', space=sflag, size = 0x8, scoped, tag = 'scoped memory for tpu_custom_call.1']
    #allocation5 [shape = 's32[2]{0}', space=sflag, size = 0x8, scoped, tag = 'scoped memory for tpu_custom_call.1']
    #allocation6 [shape = 'u8[8192]{0}', space=vmem, size = 0x2000, scoped, tag = 'output window, operand 0']
    %9 = vsyncpa [#allocation4], 0
    %10 = vsyncpa [#allocation5], 0
    %s11 = scalar_lea.sflag [#allocation5], 1
    %12 = vsyncpa %s11, 0
    loop: start=0, step=1, limit=4
    $region2: #{tpu_custom_call.1} parent=1 // loop_pre_header
      _
    $region3: #{tpu_custom_call.1} parent=1 // loop_header
      %s14 = sphi 0, %s18
      %p15 = scmp.ge.s32.totalorder %s14, 4
      %s24 = sphi 0, %s26
      %s27 = sphi 0, %s24
      %s28 = sphi 0, %s27
      %s44 = sphi 0, %s28
      %s48 = sphi 0, %s48
      %s50 = sphi 0, %s48
      %s51 = sphi 0, %s50
      %s65 = sphi 0, %s51
      %s69 = sphi 0, %s69
      %s71 = sphi 0, %s69
      %s72 = sphi 0, %s71
      %s86 = sphi 0, %s72
      %s90 = sphi 0, %s90
      %s92 = sphi 0, %s90
      %s93 = sphi 0, %s92
      %s107 = sphi 0, %s93
      %s113 = sphi 0, %s115
      %s116 = sphi 0, %s113
      %s117 = sphi 0, %s116
      %s133 = sphi 0, %s117
    $region4: #{tpu_custom_call.1} parent=1 // loop_header_branch
      %17 = sbr.rel (%p15) target = $region8
    $region5: #{tpu_custom_call.1} parent=1 // loop_body
      %s19 = ssub.s32 %s14, 1
      %s20 = ssub.s32 %s14, 2
      %s21 = sadd.s32 %s14, 1
      %s22 = ssub.s32 %s14, %s21
      %p23 = scmp.eq.s32.totalorder %s22, 0
      %s25 = sadd.s32 %s24, 1
      %s26 = scalar_select %p23, %s24, %s25
      %p29 = pneg %p23
      %p30 = scmp.eq.s32.totalorder %s14, 1
      %p31 = por %p29, %p30
      %p32 = scmp.ne.s32.totalorder %s24, %s27
      %p33 = scmp.eq.s32.totalorder %s14, 0
      %p34 = por %p32, %p33
      %p35 = scmp.ne.s32.totalorder %s24, %s27
      %p36 = scmp.eq.s32.totalorder %s19, 1
      %p37 = por %p35, %p36
      %p38 = scmp.ne.s32.totalorder %s27, %s28
      %p39 = scmp.eq.s32.totalorder %s19, 0
      %p40 = por %p38, %p39
      %p41 = scmp.ne.s32.totalorder %s27, %s28
      %p42 = scmp.eq.s32.totalorder %s20, 1
      %p43 = por %p41, %p42
      %p45 = scmp.ne.s32.totalorder %s28, %s44
      %p46 = scmp.eq.s32.totalorder %s20, 0
      %p47 = por %p45, %p46
      %s49 = sadd.s32 %s48, 1
      %p52 = scmp.eq.s32.totalorder %s14, 1
      %p53 = scmp.ne.s32.totalorder %s48, %s50
      %p54 = scmp.eq.s32.totalorder %s14, 0
      %p55 = por %p53, %p54
      %p56 = scmp.ne.s32.totalorder %s48, %s50
      %p57 = scmp.eq.s32.totalorder %s19, 1
      %p58 = por %p56, %p57
      %p59 = scmp.ne.s32.totalorder %s50, %s51
      %p60 = scmp.eq.s32.totalorder %s19, 0
      %p61 = por %p59, %p60
      %p62 = scmp.ne.s32.totalorder %s50, %s51
      %p63 = scmp.eq.s32.totalorder %s20, 1
      %p64 = por %p62, %p63
      %p66 = scmp.ne.s32.totalorder %s51, %s65
      %p67 = scmp.eq.s32.totalorder %s20, 0
      %p68 = por %p66, %p67
      %s70 = sadd.s32 %s69, 1
      %p73 = scmp.eq.s32.totalorder %s14, 1
      %p74 = scmp.ne.s32.totalorder %s69, %s71
      %p75 = scmp.eq.s32.totalorder %s14, 0
      %p76 = por %p74, %p75
      %p77 = scmp.ne.s32.totalorder %s69, %s71
      %p78 = scmp.eq.s32.totalorder %s19, 1
      %p79 = por %p77, %p78
      %p80 = scmp.ne.s32.totalorder %s71, %s72
      %p81 = scmp.eq.s32.totalorder %s19, 0
      %p82 = por %p80, %p81
      %p83 = scmp.ne.s32.totalorder %s71, %s72
      %p84 = scmp.eq.s32.totalorder %s20, 1
      %p85 = por %p83, %p84
      %p87 = scmp.ne.s32.totalorder %s72, %s86
      %p88 = scmp.eq.s32.totalorder %s20, 0
      %p89 = por %p87, %p88
      %s91 = sadd.s32 %s90, 1
      %p94 = scmp.eq.s32.totalorder %s14, 1
      %p95 = scmp.ne.s32.totalorder %s90, %s92
      %p96 = scmp.eq.s32.totalorder %s14, 0
      %p97 = por %p95, %p96
      %p98 = scmp.ne.s32.totalorder %s90, %s92
      %p99 = scmp.eq.s32.totalorder %s19, 1
      %p100 = por %p98, %p99
      %p101 = scmp.ne.s32.totalorder %s92, %s93
      %p102 = scmp.eq.s32.totalorder %s19, 0
      %p103 = por %p101, %p102
      %p104 = scmp.ne.s32.totalorder %s92, %s93
      %p105 = scmp.eq.s32.totalorder %s20, 1
      %p106 = por %p104, %p105
      %p108 = scmp.ne.s32.totalorder %s93, %s107
      %p109 = scmp.eq.s32.totalorder %s20, 0
      %p110 = por %p108, %p109
      %s111 = ssub.s32 %s14, %s21
      %p112 = scmp.eq.s32.totalorder %s111, 0
      %s114 = sadd.s32 %s113, 1
      %s115 = scalar_select %p112, %s113, %s114
      %p118 = pneg %p112
      %p119 = scmp.eq.s32.totalorder %s14, 1
      %p120 = por %p118, %p119
      %p121 = scmp.ne.s32.totalorder %s113, %s116
      %p122 = scmp.eq.s32.totalorder %s14, 0
      %p123 = por %p121, %p122
      %p124 = scmp.ne.s32.totalorder %s113, %s116
      %p125 = scmp.eq.s32.totalorder %s19, 1
      %p126 = por %p124, %p125
      %p127 = scmp.ne.s32.totalorder %s116, %s117
      %p128 = scmp.eq.s32.totalorder %s19, 0
      %p129 = por %p127, %p128
      %p130 = scmp.ne.s32.totalorder %s116, %s117
      %p131 = scmp.eq.s32.totalorder %s20, 1
      %p132 = por %p130, %p131
      %p134 = scmp.ne.s32.totalorder %s117, %s133
      %p135 = scmp.eq.s32.totalorder %s20, 0
      %p136 = por %p134, %p135
      %p137 = scmp.le.s32.totalorder 1, %s14
      %p138 = scmp.lt.s32.totalorder %s14, 3
      %p139 = pnand %p137, %p138
      %p140 = pneg %p139
      // Predicated region
      $region9: #{tpu_custom_call.1} parent=5 // pred_check
        _
      $region10: #{tpu_custom_call.1} parent=5 // pred_check_branch
        %142 = sbr.rel (%p139) target = $region12
      $region11: #{tpu_custom_call.1} parent=5 // pred_region
        %s143 = ssub.s32 %s14, 1
        // Predicated region
        $region13: #{tpu_custom_call.1} parent=11 // pred_check
          %p144 = pneg %p61
        $region14: #{tpu_custom_call.1} parent=11 // pred_check_branch
          %146 = sbr.rel (%p144) target = $region16
        $region15: #{tpu_custom_call.1} parent=11 // pred_region
          _
        $region16: #{tpu_custom_call.1} parent=11 // pred_fallthru
          _
        // Predicated region
        $region17: #{tpu_custom_call.1} parent=11 // pred_check
          %p147 = pneg %p82
        $region18: #{tpu_custom_call.1} parent=11 // pred_check_branch
          %149 = sbr.rel (%p147) target = $region20
        $region19: #{tpu_custom_call.1} parent=11 // pred_region
          %s151 = ssub.s32 10240, 10240
          %152 = vsyncadd [#allocation4], %s151
          %s153 = sshll.u32 [#allocation3], 4
          %s154 = int_to_ptr.vmem [resolvable:$true] %s153
          %159 = dma.hbm_to_vmem [thread:$0]  %s2, 10240, %s154, [#allocation4], 128, 128, 8
        $region20: #{tpu_custom_call.1} parent=11 // pred_fallthru
          _
        // Predicated region
        $region21: #{tpu_custom_call.1} parent=11 // pred_check
          %p160 = pneg %p103
        $region22: #{tpu_custom_call.1} parent=11 // pred_check_branch
          %162 = sbr.rel (%p160) target = $region24
        $region23: #{tpu_custom_call.1} parent=11 // pred_region
          _
        $region24: #{tpu_custom_call.1} parent=11 // pred_fallthru
          _
      $region12: #{tpu_custom_call.1} parent=5 // pred_fallthru
        _
      %p163 = scmp.lt.s32.totalorder %s14, 2
      // Predicated region
      $region25: #{tpu_custom_call.1} parent=5 // pred_check
        %p164 = pneg %p163
      $region26: #{tpu_custom_call.1} parent=5 // pred_check_branch
        %166 = sbr.rel (%p164) target = $region28
      $region27: #{tpu_custom_call.1} parent=5 // pred_region
        // Predicated region
        $region29: #{tpu_custom_call.1} parent=27 // pred_check
          %p167 = pneg %p34
        $region30: #{tpu_custom_call.1} parent=27 // pred_check_branch
          %169 = sbr.rel (%p167) target = $region32
        $region31: #{tpu_custom_call.1} parent=27 // pred_region
          %p170 = scmp.lt.s32.totalorder %s14, 1
          %s171 = scalar_select %p170, %s14, 1
          %s172 = smul.addr %s171, 8
          %s173 = smul.addr %s172, 8
          %s174 = scalar_lea.vmem %s0, %s173
        $region32: #{tpu_custom_call.1} parent=27 // pred_fallthru
          _
      $region28: #{tpu_custom_call.1} parent=5 // pred_fallthru
        _
      %p175 = scmp.le.s32.totalorder 1, %s14
      %p176 = scmp.lt.s32.totalorder %s14, 3
      %p177 = pnand %p175, %p176
      %p178 = pneg %p177
      // Predicated region
      $region33: #{tpu_custom_call.1} parent=5 // pred_check
        _
      $region34: #{tpu_custom_call.1} parent=5 // pred_check_branch
        %180 = sbr.rel (%p177) target = $region36
      $region35: #{tpu_custom_call.1} parent=5 // pred_region
        %s181 = ssub.s32 %s14, 1
        // Predicated region
        $region37: #{tpu_custom_call.1} parent=35 // pred_check
          %p182 = pneg %p82
        $region38: #{tpu_custom_call.1} parent=35 // pred_check_branch
          %184 = sbr.rel (%p182) target = $region40
        $region39: #{tpu_custom_call.1} parent=35 // pred_region
          %185 = dma.done [#allocation4], 10240
        $region40: #{tpu_custom_call.1} parent=35 // pred_fallthru
          _
        %p186 = scmp.lt.s32.totalorder %s19, 1
        %s187 = scalar_select %p186, %s19, 1
        %s188 = smul.addr %s187, 8
        %s189 = smul.addr %s188, 8
        %s190 = scalar_lea.vmem %s0, %s189
        %p191 = pneg %p40
        %p192 = pneg %p37
        %p193 = pneg %p61
        %p194 = pneg %p58
        %p195 = pneg %p82
        %p196 = pneg %p79
        %p197 = pneg %p103
        %p198 = pneg %p100
        %p199 = pneg %p129
        %p200 = pneg %p126
        %s201 = sand.u32 %s116, 1
        %s202 = scalar_lea.sflag [#allocation5], %s201
        %s203 = sand.u32 %s116, 1
        %s204 = smul.addr %s203, 8
        %s205 = scalar_lea.vmem [#allocation6], %s204
        %p206 = scmp.lt.s32.totalorder %s19, 1
        %s207 = scalar_select %p206, %s19, 1
        %s208 = smul.addr %s207, 8
        %s209 = smul.addr %s208, 8
        %s210 = scalar_lea.vmem %s0, %s209
        %v211 = vld [vmem:[%s210] ss:$3 sm:$0xff]
        %s212 = scalar_lea.vmem %s210, 24
        %v213 = vld [vmem:[%s212] ss:$3 sm:$0xff]
        %s214 = scalar_lea.vmem %s210, 48
        %v215 = vld [vmem:[%s214] ss:$3 sm:$0xf]
        %v216 = vld [vmem:[%s1] sm:$0xff]
        %v217 = vld [vmem:[%s1 + $0x8] sm:$0xff]
        %s218 = scalar_lea.vmem %s210, 1
        %v219 = vld [vmem:[%s218] ss:$3 sm:$0xff]
        %s220 = scalar_lea.vmem %s210, 25
        %v221 = vld [vmem:[%s220] ss:$3 sm:$0xff]
        %s222 = scalar_lea.vmem %s210, 49
        %v223 = vld [vmem:[%s222] ss:$3 sm:$0xf]
        %v224 = vld [vmem:[%s1 + $0x10] sm:$0xff]
        %v225 = vld [vmem:[%s1 + $0x18] sm:$0xff]
        %vm226 = vcmask 130048
        %v228 = vsel %vm226, %v219, 0
        %v231 = vsel %vm226, %v221, 0
        %v234 = vsel %vm226, %v223, 0
        %236 = vmatprep.subr.mxu0 0.0
        %237 = vmatpush1.msra.mxu0 0.0
        %238 = vmatprep.subr.mxu0 0.0
        %239 = vmatpush1.msra.mxu0 0.0
        %240 = vmatprep.subr.mxu0 0.0
        %241 = vmatpush1.msra.mxu0 0.0
        %242 = vmatprep.subr.mxu0 0.0
        %243 = vmatpush1.msra.mxu0 0.0
        %244 = vmatprep.subr.mxu0 0.0
        %245 = vmatpush1.msra.mxu0 0.0
        %246 = vmatprep.subr.mxu0 0.0
        %247 = vmatpush1.msra.mxu0 0.0
        %248 = vmatprep.subr.mxu0 0.0
        %249 = vmatpush1.msra.mxu0 0.0
        %250 = vmatprep.subr.mxu0 0.0
        %251 = vmatpush1.msra.mxu0 0.0
        %252 = vmatprep.subr.mxu0 0.0
        %253 = vmatpush1.msra.mxu0 0.0
        %254 = vmatprep.subr.mxu0 0.0
        %255 = vmatpush1.msra.mxu0 0.0
        %256 = vmatprep.subr.mxu0 0.0
        %257 = vmatpush1.msra.mxu0 0.0
        %258 = vmatprep.subr.mxu0 0.0
        %259 = vmatpush1.msra.mxu0 0.0
        %260 = vmatprep.subr.mxu0 0.0
        %261 = vmatpush1.msra.mxu0 0.0
        %262 = vmatprep.subr.mxu0 0.0
        %263 = vmatpush1.msra.mxu0 0.0
        %264 = vmatprep.subr.mxu0 0.0
        %265 = vmatpush1.msra.mxu0 %v225
        %266 = vmatprep.subr.mxu0 0.0
        %267 = vmatpush1.msra.mxu0 %v224
        %268 = vmatprep.subr.mxu0 0.0
        %269 = vmatpush2.msra.mxu0 0.0
        %270 = vmatprep.subr.mxu0 0.0
        %271 = vmatpush2.msra.mxu0 0.0
        %272 = vmatprep.subr.mxu0 0.0
        %273 = vmatpush2.msra.mxu0 0.0
        %274 = vmatprep.subr.mxu0 0.0
        %275 = vmatpush2.msra.mxu0 0.0
        %276 = vmatprep.subr.mxu0 0.0
        %277 = vmatpush2.msra.mxu0 0.0
        %278 = vmatprep.subr.mxu0 0.0
        %279 = vmatpush2.msra.mxu0 0.0
        %280 = vmatprep.subr.mxu0 0.0
        %281 = vmatpush2.msra.mxu0 0.0
        %282 = vmatprep.subr.mxu0 0.0
        %283 = vmatpush2.msra.mxu0 0.0
        %284 = vmatprep.subr.mxu0 0.0
        %285 = vmatpush2.msra.mxu0 0.0
        %286 = vmatprep.subr.mxu0 0.0
        %287 = vmatpush2.msra.mxu0 0.0
        %288 = vmatprep.subr.mxu0 0.0
        %289 = vmatpush2.msra.mxu0 0.0
        %290 = vmatprep.subr.mxu0 0.0
        %291 = vmatpush2.msra.mxu0 0.0
        %292 = vmatprep.subr.mxu0 0.0
        %293 = vmatpush2.msra.mxu0 0.0
        %294 = vmatprep.subr.mxu0 0.0
        %295 = vmatpush2.msra.mxu0 0.0
        %296 = vmatprep.subr.mxu0 0.0
        %297 = vmatpush2.msra.mxu0 0.0
        %298 = vmatprep.subr.mxu0 0.0
        %299 = vmatpush2.msra.mxu0 0.0
        %300 = vmatprep.mubr.f32.mxu0 0.0
        %301 = vmatmul.mubr.f32.gmra.mxu0 %v228
        %v302 = vpop.f32.mrf.mxu0
        %v303 = vadd.f32 0.0, %v302
        %v304 = vpop.f32.mrf.mxu0
        %305 = vmatprep.mubr.f32.mxu0 0.0
        %306 = vmatmul.mubr.f32.gmra.mxu0 %v231
        %v307 = vpop.f32.mrf.mxu0
        %v308 = vadd.f32 0.0, %v307
        %v309 = vpop.f32.mrf.mxu0
        %310 = vmatprep.mubr.f32.mxu0 0.0
        %311 = vmatmul.mubr.f32.gmra.mxu0 %v234
        %v312 = vpop.f32.mrf.mxu0
        %v313 = vadd.f32 0.0, %v312
        %v314 = vpop.f32.mrf.mxu0
        %315 = vdwg.mxu0
        %v317 = vsel %vm226, %v211, 0
        %v320 = vsel %vm226, %v213, 0
        %v323 = vsel %vm226, %v215, 0
        %325 = vmatprep.subr.mxu0 0.0
        %326 = vmatpush1.msra.mxu0 0.0
        %327 = vmatprep.subr.mxu0 0.0
        %328 = vmatpush1.msra.mxu0 0.0
        %329 = vmatprep.subr.mxu0 0.0
        %330 = vmatpush1.msra.mxu0 0.0
        %331 = vmatprep.subr.mxu0 0.0
        %332 = vmatpush1.msra.mxu0 0.0
        %333 = vmatprep.subr.mxu0 0.0
        %334 = vmatpush1.msra.mxu0 0.0
        %335 = vmatprep.subr.mxu0 0.0
        %336 = vmatpush1.msra.mxu0 0.0
        %337 = vmatprep.subr.mxu0 0.0
        %338 = vmatpush1.msra.mxu0 0.0
        %339 = vmatprep.subr.mxu0 0.0
        %340 = vmatpush1.msra.mxu0 0.0
        %341 = vmatprep.subr.mxu0 0.0
        %342 = vmatpush1.msra.mxu0 0.0
        %343 = vmatprep.subr.mxu0 0.0
        %344 = vmatpush1.msra.mxu0 0.0
        %345 = vmatprep.subr.mxu0 0.0
        %346 = vmatpush1.msra.mxu0 0.0
        %347 = vmatprep.subr.mxu0 0.0
        %348 = vmatpush1.msra.mxu0 0.0
        %349 = vmatprep.subr.mxu0 0.0
        %350 = vmatpush1.msra.mxu0 0.0
        %351 = vmatprep.subr.mxu0 0.0
        %352 = vmatpush1.msra.mxu0 0.0
        %353 = vmatprep.subr.mxu0 0.0
        %354 = vmatpush1.msra.mxu0 %v217
        %355 = vmatprep.subr.mxu0 0.0
        %356 = vmatpush1.msra.mxu0 %v216
        %357 = vmatprep.subr.mxu0 0.0
        %358 = vmatpush2.msra.mxu0 0.0
        %359 = vmatprep.subr.mxu0 0.0
        %360 = vmatpush2.msra.mxu0 0.0
        %361 = vmatprep.subr.mxu0 0.0
        %362 = vmatpush2.msra.mxu0 0.0
        %363 = vmatprep.subr.mxu0 0.0
        %364 = vmatpush2.msra.mxu0 0.0
        %365 = vmatprep.subr.mxu0 0.0
        %366 = vmatpush2.msra.mxu0 0.0
        %367 = vmatprep.subr.mxu0 0.0
        %368 = vmatpush2.msra.mxu0 0.0
        %369 = vmatprep.subr.mxu0 0.0
        %370 = vmatpush2.msra.mxu0 0.0
        %371 = vmatprep.subr.mxu0 0.0
        %372 = vmatpush2.msra.mxu0 0.0
        %373 = vmatprep.subr.mxu0 0.0
        %374 = vmatpush2.msra.mxu0 0.0
        %375 = vmatprep.subr.mxu0 0.0
        %376 = vmatpush2.msra.mxu0 0.0
        %377 = vmatprep.subr.mxu0 0.0
        %378 = vmatpush2.msra.mxu0 0.0
        %379 = vmatprep.subr.mxu0 0.0
        %380 = vmatpush2.msra.mxu0 0.0
        %381 = vmatprep.subr.mxu0 0.0
        %382 = vmatpush2.msra.mxu0 0.0
        %383 = vmatprep.subr.mxu0 0.0
        %384 = vmatpush2.msra.mxu0 0.0
        %385 = vmatprep.subr.mxu0 0.0
        %386 = vmatpush2.msra.mxu0 0.0
        %387 = vmatprep.subr.mxu0 0.0
        %388 = vmatpush2.msra.mxu0 0.0
        %389 = vmatprep.mubr.f32.mxu0 0.0
        %390 = vmatmul.mubr.f32.gmra.mxu0 %v317
        %v391 = vpop.f32.mrf.mxu0
        %v392 = vadd.f32 %v303, %v391
        %v393 = vpop.f32.mrf.mxu0
        %394 = vmatprep.mubr.f32.mxu0 0.0
        %395 = vmatmul.mubr.f32.gmra.mxu0 %v320
        %v396 = vpop.f32.mrf.mxu0
        %v397 = vadd.f32 %v308, %v396
        %v398 = vpop.f32.mrf.mxu0
        %399 = vmatprep.mubr.f32.mxu0 0.0
        %400 = vmatmul.mubr.f32.gmra.mxu0 %v323
        %v401 = vpop.f32.mrf.mxu0
        %v402 = vadd.f32 %v313, %v401
        %v403 = vpop.f32.mrf.mxu0
        %404 = vdwg.mxu0
        %s405 = scalar_lea.vmem %s210, 2
        %v406 = vld [vmem:[%s405] ss:$3 sm:$0xff]
        %s407 = scalar_lea.vmem %s210, 26
        %v408 = vld [vmem:[%s407] ss:$3 sm:$0xff]
        %s409 = scalar_lea.vmem %s210, 50
        %v410 = vld [vmem:[%s409] ss:$3 sm:$0xf]
        %v411 = vld [vmem:[%s1 + $0x20] sm:$0xff]
        %v412 = vld [vmem:[%s1 + $0x28] sm:$0xff]
        %v414 = vsel %vm226, %v406, 0
        %v417 = vsel %vm226, %v408, 0
        %v420 = vsel %vm226, %v410, 0
        %422 = vmatprep.subr.mxu0 0.0
        %423 = vmatpush1.msra.mxu0 0.0
        %424 = vmatprep.subr.mxu0 0.0
        %425 = vmatpush1.msra.mxu0 0.0
        %426 = vmatprep.subr.mxu0 0.0
        %427 = vmatpush1.msra.mxu0 0.0
        %428 = vmatprep.subr.mxu0 0.0
        %429 = vmatpush1.msra.mxu0 0.0
        %430 = vmatprep.subr.mxu0 0.0
        %431 = vmatpush1.msra.mxu0 0.0
        %432 = vmatprep.subr.mxu0 0.0
        %433 = vmatpush1.msra.mxu0 0.0
        %434 = vmatprep.subr.mxu0 0.0
        %435 = vmatpush1.msra.mxu0 0.0
        %436 = vmatprep.subr.mxu0 0.0
        %437 = vmatpush1.msra.mxu0 0.0
        %438 = vmatprep.subr.mxu0 0.0
        %439 = vmatpush1.msra.mxu0 0.0
        %440 = vmatprep.subr.mxu0 0.0
        %441 = vmatpush1.msra.mxu0 0.0
        %442 = vmatprep.subr.mxu0 0.0
        %443 = vmatpush1.msra.mxu0 0.0
        %444 = vmatprep.subr.mxu0 0.0
        %445 = vmatpush1.msra.mxu0 0.0
        %446 = vmatprep.subr.mxu0 0.0
        %447 = vmatpush1.msra.mxu0 0.0
        %448 = vmatprep.subr.mxu0 0.0
        %449 = vmatpush1.msra.mxu0 0.0
        %450 = vmatprep.subr.mxu0 0.0
        %451 = vmatpush1.msra.mxu0 %v412
        %452 = vmatprep.subr.mxu0 0.0
        %453 = vmatpush1.msra.mxu0 %v411
        %454 = vmatprep.subr.mxu0 0.0
        %455 = vmatpush2.msra.mxu0 0.0
        %456 = vmatprep.subr.mxu0 0.0
        %457 = vmatpush2.msra.mxu0 0.0
        %458 = vmatprep.subr.mxu0 0.0
        %459 = vmatpush2.msra.mxu0 0.0
        %460 = vmatprep.subr.mxu0 0.0
        %461 = vmatpush2.msra.mxu0 0.0
        %462 = vmatprep.subr.mxu0 0.0
        %463 = vmatpush2.msra.mxu0 0.0
        %464 = vmatprep.subr.mxu0 0.0
        %465 = vmatpush2.msra.mxu0 0.0
        %466 = vmatprep.subr.mxu0 0.0
        %467 = vmatpush2.msra.mxu0 0.0
        %468 = vmatprep.subr.mxu0 0.0
        %469 = vmatpush2.msra.mxu0 0.0
        %470 = vmatprep.subr.mxu0 0.0
        %471 = vmatpush2.msra.mxu0 0.0
        %472 = vmatprep.subr.mxu0 0.0
        %473 = vmatpush2.msra.mxu0 0.0
        %474 = vmatprep.subr.mxu0 0.0
        %475 = vmatpush2.msra.mxu0 0.0
        %476 = vmatprep.subr.mxu0 0.0
        %477 = vmatpush2.msra.mxu0 0.0
        %478 = vmatprep.subr.mxu0 0.0
        %479 = vmatpush2.msra.mxu0 0.0
        %480 = vmatprep.subr.mxu0 0.0
        %481 = vmatpush2.msra.mxu0 0.0
        %482 = vmatprep.subr.mxu0 0.0
        %483 = vmatpush2.msra.mxu0 0.0
        %484 = vmatprep.subr.mxu0 0.0
        %485 = vmatpush2.msra.mxu0 0.0
        %486 = vmatprep.mubr.f32.mxu0 0.0
        %487 = vmatmul.mubr.f32.gmra.mxu0 %v414
        %v488 = vpop.f32.mrf.mxu0
        %v489 = vadd.f32 0.0, %v488
        %v490 = vpop.f32.mrf.mxu0
        %491 = vmatprep.mubr.f32.mxu0 0.0
        %492 = vmatmul.mubr.f32.gmra.mxu0 %v417
        %v493 = vpop.f32.mrf.mxu0
        %v494 = vadd.f32 0.0, %v493
        %v495 = vpop.f32.mrf.mxu0
        %496 = vmatprep.mubr.f32.mxu0 0.0
        %497 = vmatmul.mubr.f32.gmra.mxu0 %v420
        %v498 = vpop.f32.mrf.mxu0
        %v499 = vadd.f32 0.0, %v498
        %v500 = vpop.f32.mrf.mxu0
        %501 = vdwg.mxu0
        %v502 = vadd.f32 %v392, %v489
        %v503 = vadd.f32 %v397, %v494
        %v504 = vadd.f32 %v402, %v499
        %s505 = scalar_lea.vmem %s210, 3
        %v506 = vld [vmem:[%s505] ss:$3 sm:$0xff]
        %s507 = scalar_lea.vmem %s210, 27
        %v508 = vld [vmem:[%s507] ss:$3 sm:$0xff]
        %s509 = scalar_lea.vmem %s210, 51
        %v510 = vld [vmem:[%s509] ss:$3 sm:$0xf]
        %v511 = vld [vmem:[%s1 + $0x30] sm:$0xff]
        %v512 = vld [vmem:[%s1 + $0x38] sm:$0xff]
        %v514 = vsel %vm226, %v506, 0
        %v517 = vsel %vm226, %v508, 0
        %v520 = vsel %vm226, %v510, 0
        %522 = vmatprep.subr.mxu0 0.0
        %523 = vmatpush1.msra.mxu0 0.0
        %524 = vmatprep.subr.mxu0 0.0
        %525 = vmatpush1.msra.mxu0 0.0
        %526 = vmatprep.subr.mxu0 0.0
        %527 = vmatpush1.msra.mxu0 0.0
        %528 = vmatprep.subr.mxu0 0.0
        %529 = vmatpush1.msra.mxu0 0.0
        %530 = vmatprep.subr.mxu0 0.0
        %531 = vmatpush1.msra.mxu0 0.0
        %532 = vmatprep.subr.mxu0 0.0
        %533 = vmatpush1.msra.mxu0 0.0
        %534 = vmatprep.subr.mxu0 0.0
        %535 = vmatpush1.msra.mxu0 0.0
        %536 = vmatprep.subr.mxu0 0.0
        %537 = vmatpush1.msra.mxu0 0.0
        %538 = vmatprep.subr.mxu0 0.0
        %539 = vmatpush1.msra.mxu0 0.0
        %540 = vmatprep.subr.mxu0 0.0
        %541 = vmatpush1.msra.mxu0 0.0
        %542 = vmatprep.subr.mxu0 0.0
        %543 = vmatpush1.msra.mxu0 0.0
        %544 = vmatprep.subr.mxu0 0.0
        %545 = vmatpush1.msra.mxu0 0.0
        %546 = vmatprep.subr.mxu0 0.0
        %547 = vmatpush1.msra.mxu0 0.0
        %548 = vmatprep.subr.mxu0 0.0
        %549 = vmatpush1.msra.mxu0 0.0
        %550 = vmatprep.subr.mxu0 0.0
        %551 = vmatpush1.msra.mxu0 %v512
        %552 = vmatprep.subr.mxu0 0.0
        %553 = vmatpush1.msra.mxu0 %v511
        %554 = vmatprep.subr.mxu0 0.0
        %555 = vmatpush2.msra.mxu0 0.0
        %556 = vmatprep.subr.mxu0 0.0
        %557 = vmatpush2.msra.mxu0 0.0
        %558 = vmatprep.subr.mxu0 0.0
        %559 = vmatpush2.msra.mxu0 0.0
        %560 = vmatprep.subr.mxu0 0.0
        %561 = vmatpush2.msra.mxu0 0.0
        %562 = vmatprep.subr.mxu0 0.0
        %563 = vmatpush2.msra.mxu0 0.0
        %564 = vmatprep.subr.mxu0 0.0
        %565 = vmatpush2.msra.mxu0 0.0
        %566 = vmatprep.subr.mxu0 0.0
        %567 = vmatpush2.msra.mxu0 0.0
        %568 = vmatprep.subr.mxu0 0.0
        %569 = vmatpush2.msra.mxu0 0.0
        %570 = vmatprep.subr.mxu0 0.0
        %571 = vmatpush2.msra.mxu0 0.0
        %572 = vmatprep.subr.mxu0 0.0
        %573 = vmatpush2.msra.mxu0 0.0
        %574 = vmatprep.subr.mxu0 0.0
        %575 = vmatpush2.msra.mxu0 0.0
        %576 = vmatprep.subr.mxu0 0.0
        %577 = vmatpush2.msra.mxu0 0.0
        %578 = vmatprep.subr.mxu0 0.0
        %579 = vmatpush2.msra.mxu0 0.0
        %580 = vmatprep.subr.mxu0 0.0
        %581 = vmatpush2.msra.mxu0 0.0
        %582 = vmatprep.subr.mxu0 0.0
        %583 = vmatpush2.msra.mxu0 0.0
        %584 = vmatprep.subr.mxu0 0.0
        %585 = vmatpush2.msra.mxu0 0.0
        %586 = vmatprep.mubr.f32.mxu0 0.0
        %587 = vmatmul.mubr.f32.gmra.mxu0 %v514
        %v588 = vpop.f32.mrf.mxu0
        %v589 = vadd.f32 0.0, %v588
        %v590 = vpop.f32.mrf.mxu0
        %591 = vmatprep.mubr.f32.mxu0 0.0
        %592 = vmatmul.mubr.f32.gmra.mxu0 %v517
        %v593 = vpop.f32.mrf.mxu0
        %v594 = vadd.f32 0.0, %v593
        %v595 = vpop.f32.mrf.mxu0
        %596 = vmatprep.mubr.f32.mxu0 0.0
        %597 = vmatmul.mubr.f32.gmra.mxu0 %v520
        %v598 = vpop.f32.mrf.mxu0
        %v599 = vadd.f32 0.0, %v598
        %v600 = vpop.f32.mrf.mxu0
        %601 = vdwg.mxu0
        %v602 = vadd.f32 %v502, %v589
        %v603 = vadd.f32 %v503, %v594
        %v604 = vadd.f32 %v504, %v599
        %s605 = scalar_lea.vmem %s210, 4
        %v606 = vld [vmem:[%s605] ss:$3 sm:$0xff]
        %s607 = scalar_lea.vmem %s210, 28
        %v608 = vld [vmem:[%s607] ss:$3 sm:$0xff]
        %s609 = scalar_lea.vmem %s210, 52
        %v610 = vld [vmem:[%s609] ss:$3 sm:$0xf]
        %v611 = vld [vmem:[%s1 + $0x40] sm:$0xff]
        %v612 = vld [vmem:[%s1 + $0x48] sm:$0xff]
        %v614 = vsel %vm226, %v606, 0
        %v617 = vsel %vm226, %v608, 0
        %v620 = vsel %vm226, %v610, 0
        %622 = vmatprep.subr.mxu0 0.0
        %623 = vmatpush1.msra.mxu0 0.0
        %624 = vmatprep.subr.mxu0 0.0
        %625 = vmatpush1.msra.mxu0 0.0
        %626 = vmatprep.subr.mxu0 0.0
        %627 = vmatpush1.msra.mxu0 0.0
        %628 = vmatprep.subr.mxu0 0.0
        %629 = vmatpush1.msra.mxu0 0.0
        %630 = vmatprep.subr.mxu0 0.0
        %631 = vmatpush1.msra.mxu0 0.0
        %632 = vmatprep.subr.mxu0 0.0
        %633 = vmatpush1.msra.mxu0 0.0
        %634 = vmatprep.subr.mxu0 0.0
        %635 = vmatpush1.msra.mxu0 0.0
        %636 = vmatprep.subr.mxu0 0.0
        %637 = vmatpush1.msra.mxu0 0.0
        %638 = vmatprep.subr.mxu0 0.0
        %639 = vmatpush1.msra.mxu0 0.0
        %640 = vmatprep.subr.mxu0 0.0
        %641 = vmatpush1.msra.mxu0 0.0
        %642 = vmatprep.subr.mxu0 0.0
        %643 = vmatpush1.msra.mxu0 0.0
        %644 = vmatprep.subr.mxu0 0.0
        %645 = vmatpush1.msra.mxu0 0.0
        %646 = vmatprep.subr.mxu0 0.0
        %647 = vmatpush1.msra.mxu0 0.0
        %648 = vmatprep.subr.mxu0 0.0
        %649 = vmatpush1.msra.mxu0 0.0
        %650 = vmatprep.subr.mxu0 0.0
        %651 = vmatpush1.msra.mxu0 %v612
        %652 = vmatprep.subr.mxu0 0.0
        %653 = vmatpush1.msra.mxu0 %v611
        %654 = vmatprep.subr.mxu0 0.0
        %655 = vmatpush2.msra.mxu0 0.0
        %656 = vmatprep.subr.mxu0 0.0
        %657 = vmatpush2.msra.mxu0 0.0
        %658 = vmatprep.subr.mxu0 0.0
        %659 = vmatpush2.msra.mxu0 0.0
        %660 = vmatprep.subr.mxu0 0.0
        %661 = vmatpush2.msra.mxu0 0.0
        %662 = vmatprep.subr.mxu0 0.0
        %663 = vmatpush2.msra.mxu0 0.0
        %664 = vmatprep.subr.mxu0 0.0
        %665 = vmatpush2.msra.mxu0 0.0
        %666 = vmatprep.subr.mxu0 0.0
        %667 = vmatpush2.msra.mxu0 0.0
        %668 = vmatprep.subr.mxu0 0.0
        %669 = vmatpush2.msra.mxu0 0.0
        %670 = vmatprep.subr.mxu0 0.0
        %671 = vmatpush2.msra.mxu0 0.0
        %672 = vmatprep.subr.mxu0 0.0
        %673 = vmatpush2.msra.mxu0 0.0
        %674 = vmatprep.subr.mxu0 0.0
        %675 = vmatpush2.msra.mxu0 0.0
        %676 = vmatprep.subr.mxu0 0.0
        %677 = vmatpush2.msra.mxu0 0.0
        %678 = vmatprep.subr.mxu0 0.0
        %679 = vmatpush2.msra.mxu0 0.0
        %680 = vmatprep.subr.mxu0 0.0
        %681 = vmatpush2.msra.mxu0 0.0
        %682 = vmatprep.subr.mxu0 0.0
        %683 = vmatpush2.msra.mxu0 0.0
        %684 = vmatprep.subr.mxu0 0.0
        %685 = vmatpush2.msra.mxu0 0.0
        %686 = vmatprep.mubr.f32.mxu0 0.0
        %687 = vmatmul.mubr.f32.gmra.mxu0 %v614
        %v688 = vpop.f32.mrf.mxu0
        %v689 = vadd.f32 0.0, %v688
        %v690 = vpop.f32.mrf.mxu0
        %691 = vmatprep.mubr.f32.mxu0 0.0
        %692 = vmatmul.mubr.f32.gmra.mxu0 %v617
        %v693 = vpop.f32.mrf.mxu0
        %v694 = vadd.f32 0.0, %v693
        %v695 = vpop.f32.mrf.mxu0
        %696 = vmatprep.mubr.f32.mxu0 0.0
        %697 = vmatmul.mubr.f32.gmra.mxu0 %v620
        %v698 = vpop.f32.mrf.mxu0
        %v699 = vadd.f32 0.0, %v698
        %v700 = vpop.f32.mrf.mxu0
        %701 = vdwg.mxu0
        %v702 = vadd.f32 %v602, %v689
        %v703 = vadd.f32 %v603, %v694
        %v704 = vadd.f32 %v604, %v699
        %705 = vst [vmem:[#allocation2] sm:$0xff] %v702
        %706 = vst [vmem:[#allocation2 + $0x8] sm:$0xff] %v703
        %707 = vst [vmem:[#allocation2 + $0x10] sm:$0xf] %v704
        %v708 = vld [vmem:[%s3] sm:$0xff]
        %v709 = vld [vmem:[#allocation2] ss:$2 sm:$0xff]
        %v710 = vld [vmem:[#allocation3] sm:$0xff]
        %v711 = vld [vmem:[#allocation3 + $0x8] sm:$0xff]
        %v712 = vld [vmem:[#allocation3 + $0x10] sm:$0xff]
        %v713 = vld [vmem:[#allocation3 + $0x18] sm:$0xff]
        %v714 = vld [vmem:[#allocation3 + $0x20] sm:$0xff]
        %v715 = vld [vmem:[#allocation3 + $0x28] sm:$0xff]
        %v716 = vld [vmem:[#allocation3 + $0x30] sm:$0xff]
        %v717 = vld [vmem:[#allocation3 + $0x38] sm:$0xff]
        %v718 = vld [vmem:[#allocation3 + $0x40] sm:$0xff]
        %v719 = vld [vmem:[#allocation3 + $0x48] sm:$0xff]
        %v720 = vld [vmem:[#allocation3 + $0x50] sm:$0xff]
        %v721 = vld [vmem:[#allocation3 + $0x58] sm:$0xff]
        %v722 = vld [vmem:[#allocation3 + $0x60] sm:$0xff]
        %v723 = vld [vmem:[#allocation3 + $0x68] sm:$0xff]
        %v724 = vld [vmem:[#allocation3 + $0x70] sm:$0xff]
        %v725 = vld [vmem:[#allocation3 + $0x78] sm:$0xff]
        %726 = vmatprep.subr.mxu0 0.0
        %727 = vmatpush1.msra.mxu0 %v725
        %728 = vmatprep.subr.mxu0 0.0
        %729 = vmatpush1.msra.mxu0 %v724
        %730 = vmatprep.subr.mxu0 0.0
        %731 = vmatpush1.msra.mxu0 %v723
        %732 = vmatprep.subr.mxu0 0.0
        %733 = vmatpush1.msra.mxu0 %v722
        %734 = vmatprep.subr.mxu0 0.0
        %735 = vmatpush1.msra.mxu0 %v721
        %736 = vmatprep.subr.mxu0 0.0
        %737 = vmatpush1.msra.mxu0 %v720
        %738 = vmatprep.subr.mxu0 0.0
        %739 = vmatpush1.msra.mxu0 %v719
        %740 = vmatprep.subr.mxu0 0.0
        %741 = vmatpush1.msra.mxu0 %v718
        %742 = vmatprep.subr.mxu0 0.0
        %743 = vmatpush1.msra.mxu0 %v717
        %744 = vmatprep.subr.mxu0 0.0
        %745 = vmatpush1.msra.mxu0 %v716
        %746 = vmatprep.subr.mxu0 0.0
        %747 = vmatpush1.msra.mxu0 %v715
        %748 = vmatprep.subr.mxu0 0.0
        %749 = vmatpush1.msra.mxu0 %v714
        %750 = vmatprep.subr.mxu0 0.0
        %751 = vmatpush1.msra.mxu0 %v713
        %752 = vmatprep.subr.mxu0 0.0
        %753 = vmatpush1.msra.mxu0 %v712
        %754 = vmatprep.subr.mxu0 0.0
        %755 = vmatpush1.msra.mxu0 %v711
        %756 = vmatprep.subr.mxu0 0.0
        %757 = vmatpush1.msra.mxu0 %v710
        %758 = vmatprep.subr.mxu0 0.0
        %759 = vmatpush2.msra.mxu0 0.0
        %760 = vmatprep.subr.mxu0 0.0
        %761 = vmatpush2.msra.mxu0 0.0
        %762 = vmatprep.subr.mxu0 0.0
        %763 = vmatpush2.msra.mxu0 0.0
        %764 = vmatprep.subr.mxu0 0.0
        %765 = vmatpush2.msra.mxu0 0.0
        %766 = vmatprep.subr.mxu0 0.0
        %767 = vmatpush2.msra.mxu0 0.0
        %768 = vmatprep.subr.mxu0 0.0
        %769 = vmatpush2.msra.mxu0 0.0
        %770 = vmatprep.subr.mxu0 0.0
        %771 = vmatpush2.msra.mxu0 0.0
        %772 = vmatprep.subr.mxu0 0.0
        %773 = vmatpush2.msra.mxu0 0.0
        %774 = vmatprep.subr.mxu0 0.0
        %775 = vmatpush2.msra.mxu0 0.0
        %776 = vmatprep.subr.mxu0 0.0
        %777 = vmatpush2.msra.mxu0 0.0
        %778 = vmatprep.subr.mxu0 0.0
        %779 = vmatpush2.msra.mxu0 0.0
        %780 = vmatprep.subr.mxu0 0.0
        %781 = vmatpush2.msra.mxu0 0.0
        %782 = vmatprep.subr.mxu0 0.0
        %783 = vmatpush2.msra.mxu0 0.0
        %784 = vmatprep.subr.mxu0 0.0
        %785 = vmatpush2.msra.mxu0 0.0
        %786 = vmatprep.subr.mxu0 0.0
        %787 = vmatpush2.msra.mxu0 0.0
        %788 = vmatprep.subr.mxu0 0.0
        %789 = vmatpush2.msra.mxu0 0.0
        %790 = vmatprep.mubr.f32.mxu0 0.0
        %791 = vmatmul.mubr.f32.gmra.mxu0 %v709
        %v792 = vpop.f32.mrf.mxu0
        %v793 = vadd.f32 0.0, %v792
        %v794 = vpop.f32.mrf.mxu0
        %795 = vdwg.mxu0
        %v796 = vadd.f32 %v708, %v793
        %s797 = scalar_lea.vmem [#allocation2], 1
        %v798 = vld [vmem:[%s797] ss:$2 sm:$0xff]
        %v799 = vld [vmem:[#allocation3 + $0x80] sm:$0xff]
        %v800 = vld [vmem:[#allocation3 + $0x88] sm:$0xff]
        %v801 = vld [vmem:[#allocation3 + $0x90] sm:$0xff]
        %v802 = vld [vmem:[#allocation3 + $0x98] sm:$0xff]
        %v803 = vld [vmem:[#allocation3 + $0xa0] sm:$0xff]
        %v804 = vld [vmem:[#allocation3 + $0xa8] sm:$0xff]
        %v805 = vld [vmem:[#allocation3 + $0xb0] sm:$0xff]
        %v806 = vld [vmem:[#allocation3 + $0xb8] sm:$0xff]
        %v807 = vld [vmem:[#allocation3 + $0xc0] sm:$0xff]
        %v808 = vld [vmem:[#allocation3 + $0xc8] sm:$0xff]
        %v809 = vld [vmem:[#allocation3 + $0xd0] sm:$0xff]
        %v810 = vld [vmem:[#allocation3 + $0xd8] sm:$0xff]
        %v811 = vld [vmem:[#allocation3 + $0xe0] sm:$0xff]
        %v812 = vld [vmem:[#allocation3 + $0xe8] sm:$0xff]
        %v813 = vld [vmem:[#allocation3 + $0xf0] sm:$0xff]
        %v814 = vld [vmem:[#allocation3 + $0xf8] sm:$0xff]
        %815 = vmatprep.subr.mxu0 0.0
        %816 = vmatpush1.msra.mxu0 %v814
        %817 = vmatprep.subr.mxu0 0.0
        %818 = vmatpush1.msra.mxu0 %v813
        %819 = vmatprep.subr.mxu0 0.0
        %820 = vmatpush1.msra.mxu0 %v812
        %821 = vmatprep.subr.mxu0 0.0
        %822 = vmatpush1.msra.mxu0 %v811
        %823 = vmatprep.subr.mxu0 0.0
        %824 = vmatpush1.msra.mxu0 %v810
        %825 = vmatprep.subr.mxu0 0.0
        %826 = vmatpush1.msra.mxu0 %v809
        %827 = vmatprep.subr.mxu0 0.0
        %828 = vmatpush1.msra.mxu0 %v808
        %829 = vmatprep.subr.mxu0 0.0
        %830 = vmatpush1.msra.mxu0 %v807
        %831 = vmatprep.subr.mxu0 0.0
        %832 = vmatpush1.msra.mxu0 %v806
        %833 = vmatprep.subr.mxu0 0.0
        %834 = vmatpush1.msra.mxu0 %v805
        %835 = vmatprep.subr.mxu0 0.0
        %836 = vmatpush1.msra.mxu0 %v804
        %837 = vmatprep.subr.mxu0 0.0
        %838 = vmatpush1.msra.mxu0 %v803
        %839 = vmatprep.subr.mxu0 0.0
        %840 = vmatpush1.msra.mxu0 %v802
        %841 = vmatprep.subr.mxu0 0.0
        %842 = vmatpush1.msra.mxu0 %v801
        %843 = vmatprep.subr.mxu0 0.0
        %844 = vmatpush1.msra.mxu0 %v800
        %845 = vmatprep.subr.mxu0 0.0
        %846 = vmatpush1.msra.mxu0 %v799
        %847 = vmatprep.subr.mxu0 0.0
        %848 = vmatpush2.msra.mxu0 0.0
        %849 = vmatprep.subr.mxu0 0.0
        %850 = vmatpush2.msra.mxu0 0.0
        %851 = vmatprep.subr.mxu0 0.0
        %852 = vmatpush2.msra.mxu0 0.0
        %853 = vmatprep.subr.mxu0 0.0
        %854 = vmatpush2.msra.mxu0 0.0
        %855 = vmatprep.subr.mxu0 0.0
        %856 = vmatpush2.msra.mxu0 0.0
        %857 = vmatprep.subr.mxu0 0.0
        %858 = vmatpush2.msra.mxu0 0.0
        %859 = vmatprep.subr.mxu0 0.0
        %860 = vmatpush2.msra.mxu0 0.0
        %861 = vmatprep.subr.mxu0 0.0
        %862 = vmatpush2.msra.mxu0 0.0
        %863 = vmatprep.subr.mxu0 0.0
        %864 = vmatpush2.msra.mxu0 0.0
        %865 = vmatprep.subr.mxu0 0.0
        %866 = vmatpush2.msra.mxu0 0.0
        %867 = vmatprep.subr.mxu0 0.0
        %868 = vmatpush2.msra.mxu0 0.0
        %869 = vmatprep.subr.mxu0 0.0
        %870 = vmatpush2.msra.mxu0 0.0
        %871 = vmatprep.subr.mxu0 0.0
        %872 = vmatpush2.msra.mxu0 0.0
        %873 = vmatprep.subr.mxu0 0.0
        %874 = vmatpush2.msra.mxu0 0.0
        %875 = vmatprep.subr.mxu0 0.0
        %876 = vmatpush2.msra.mxu0 0.0
        %877 = vmatprep.subr.mxu0 0.0
        %878 = vmatpush2.msra.mxu0 0.0
        %879 = vmatprep.mubr.f32.mxu0 0.0
        %880 = vmatmul.mubr.f32.gmra.mxu0 %v798
        %v881 = vpop.f32.mrf.mxu0
        %v882 = vadd.f32 0.0, %v881
        %v883 = vpop.f32.mrf.mxu0
        %884 = vdwg.mxu0
        %v885 = vadd.f32 %v796, %v882
        %s886 = scalar_lea.vmem [#allocation2], 2
        %v887 = vld [vmem:[%s886] ss:$2 sm:$0xff]
        %v888 = vld [vmem:[#allocation3 + $0x100] sm:$0xff]
        %v889 = vld [vmem:[#allocation3 + $0x108] sm:$0xff]
        %v890 = vld [vmem:[#allocation3 + $0x110] sm:$0xff]
        %v891 = vld [vmem:[#allocation3 + $0x118] sm:$0xff]
        %v892 = vld [vmem:[#allocation3 + $0x120] sm:$0xff]
        %v893 = vld [vmem:[#allocation3 + $0x128] sm:$0xff]
        %v894 = vld [vmem:[#allocation3 + $0x130] sm:$0xff]
        %v895 = vld [vmem:[#allocation3 + $0x138] sm:$0xff]
        %v896 = vld [vmem:[#allocation3 + $0x140] sm:$0xff]
        %v897 = vld [vmem:[#allocation3 + $0x148] sm:$0xff]
        %v898 = vld [vmem:[#allocation3 + $0x150] sm:$0xff]
        %v899 = vld [vmem:[#allocation3 + $0x158] sm:$0xff]
        %v900 = vld [vmem:[#allocation3 + $0x160] sm:$0xff]
        %v901 = vld [vmem:[#allocation3 + $0x168] sm:$0xff]
        %v902 = vld [vmem:[#allocation3 + $0x170] sm:$0xff]
        %v903 = vld [vmem:[#allocation3 + $0x178] sm:$0xff]
        %904 = vmatprep.subr.mxu0 0.0
        %905 = vmatpush1.msra.mxu0 %v903
        %906 = vmatprep.subr.mxu0 0.0
        %907 = vmatpush1.msra.mxu0 %v902
        %908 = vmatprep.subr.mxu0 0.0
        %909 = vmatpush1.msra.mxu0 %v901
        %910 = vmatprep.subr.mxu0 0.0
        %911 = vmatpush1.msra.mxu0 %v900
        %912 = vmatprep.subr.mxu0 0.0
        %913 = vmatpush1.msra.mxu0 %v899
        %914 = vmatprep.subr.mxu0 0.0
        %915 = vmatpush1.msra.mxu0 %v898
        %916 = vmatprep.subr.mxu0 0.0
        %917 = vmatpush1.msra.mxu0 %v897
        %918 = vmatprep.subr.mxu0 0.0
        %919 = vmatpush1.msra.mxu0 %v896
        %920 = vmatprep.subr.mxu0 0.0
        %921 = vmatpush1.msra.mxu0 %v895
        %922 = vmatprep.subr.mxu0 0.0
        %923 = vmatpush1.msra.mxu0 %v894
        %924 = vmatprep.subr.mxu0 0.0
        %925 = vmatpush1.msra.mxu0 %v893
        %926 = vmatprep.subr.mxu0 0.0
        %927 = vmatpush1.msra.mxu0 %v892
        %928 = vmatprep.subr.mxu0 0.0
        %929 = vmatpush1.msra.mxu0 %v891
        %930 = vmatprep.subr.mxu0 0.0
        %931 = vmatpush1.msra.mxu0 %v890
        %932 = vmatprep.subr.mxu0 0.0
        %933 = vmatpush1.msra.mxu0 %v889
        %934 = vmatprep.subr.mxu0 0.0
        %935 = vmatpush1.msra.mxu0 %v888
        %936 = vmatprep.subr.mxu0 0.0
        %937 = vmatpush2.msra.mxu0 0.0
        %938 = vmatprep.subr.mxu0 0.0
        %939 = vmatpush2.msra.mxu0 0.0
        %940 = vmatprep.subr.mxu0 0.0
        %941 = vmatpush2.msra.mxu0 0.0
        %942 = vmatprep.subr.mxu0 0.0
        %943 = vmatpush2.msra.mxu0 0.0
        %944 = vmatprep.subr.mxu0 0.0
        %945 = vmatpush2.msra.mxu0 0.0
        %946 = vmatprep.subr.mxu0 0.0
        %947 = vmatpush2.msra.mxu0 0.0
        %948 = vmatprep.subr.mxu0 0.0
        %949 = vmatpush2.msra.mxu0 0.0
        %950 = vmatprep.subr.mxu0 0.0
        %951 = vmatpush2.msra.mxu0 0.0
        %952 = vmatprep.subr.mxu0 0.0
        %953 = vmatpush2.msra.mxu0 0.0
        %954 = vmatprep.subr.mxu0 0.0
        %955 = vmatpush2.msra.mxu0 0.0
        %956 = vmatprep.subr.mxu0 0.0
        %957 = vmatpush2.msra.mxu0 0.0
        %958 = vmatprep.subr.mxu0 0.0
        %959 = vmatpush2.msra.mxu0 0.0
        %960 = vmatprep.subr.mxu0 0.0
        %961 = vmatpush2.msra.mxu0 0.0
        %962 = vmatprep.subr.mxu0 0.0
        %963 = vmatpush2.msra.mxu0 0.0
        %964 = vmatprep.subr.mxu0 0.0
        %965 = vmatpush2.msra.mxu0 0.0
        %966 = vmatprep.subr.mxu0 0.0
        %967 = vmatpush2.msra.mxu0 0.0
        %968 = vmatprep.mubr.f32.mxu0 0.0
        %969 = vmatmul.mubr.f32.gmra.mxu0 %v887
        %v970 = vpop.f32.mrf.mxu0
        %v971 = vadd.f32 0.0, %v970
        %v972 = vpop.f32.mrf.mxu0
        %973 = vdwg.mxu0
        %v974 = vadd.f32 %v885, %v971
        %s975 = scalar_lea.vmem [#allocation2], 3
        %v976 = vld [vmem:[%s975] ss:$2 sm:$0xff]
        %v977 = vld [vmem:[#allocation3 + $0x180] sm:$0xff]
        %v978 = vld [vmem:[#allocation3 + $0x188] sm:$0xff]
        %v979 = vld [vmem:[#allocation3 + $0x190] sm:$0xff]
        %v980 = vld [vmem:[#allocation3 + $0x198] sm:$0xff]
        %v981 = vld [vmem:[#allocation3 + $0x1a0] sm:$0xff]
        %v982 = vld [vmem:[#allocation3 + $0x1a8] sm:$0xff]
        %v983 = vld [vmem:[#allocation3 + $0x1b0] sm:$0xff]
        %v984 = vld [vmem:[#allocation3 + $0x1b8] sm:$0xff]
        %v985 = vld [vmem:[#allocation3 + $0x1c0] sm:$0xff]
        %v986 = vld [vmem:[#allocation3 + $0x1c8] sm:$0xff]
        %v987 = vld [vmem:[#allocation3 + $0x1d0] sm:$0xff]
        %v988 = vld [vmem:[#allocation3 + $0x1d8] sm:$0xff]
        %v989 = vld [vmem:[#allocation3 + $0x1e0] sm:$0xff]
        %v990 = vld [vmem:[#allocation3 + $0x1e8] sm:$0xff]
        %v991 = vld [vmem:[#allocation3 + $0x1f0] sm:$0xff]
        %v992 = vld [vmem:[#allocation3 + $0x1f8] sm:$0xff]
        %993 = vmatprep.subr.mxu0 0.0
        %994 = vmatpush1.msra.mxu0 %v992
        %995 = vmatprep.subr.mxu0 0.0
        %996 = vmatpush1.msra.mxu0 %v991
        %997 = vmatprep.subr.mxu0 0.0
        %998 = vmatpush1.msra.mxu0 %v990
        %999 = vmatprep.subr.mxu0 0.0
        %1000 = vmatpush1.msra.mxu0 %v989
        %1001 = vmatprep.subr.mxu0 0.0
        %1002 = vmatpush1.msra.mxu0 %v988
        %1003 = vmatprep.subr.mxu0 0.0
        %1004 = vmatpush1.msra.mxu0 %v987
        %1005 = vmatprep.subr.mxu0 0.0
        %1006 = vmatpush1.msra.mxu0 %v986
        %1007 = vmatprep.subr.mxu0 0.0
        %1008 = vmatpush1.msra.mxu0 %v985
        %1009 = vmatprep.subr.mxu0 0.0
        %1010 = vmatpush1.msra.mxu0 %v984
        %1011 = vmatprep.subr.mxu0 0.0
        %1012 = vmatpush1.msra.mxu0 %v983
        %1013 = vmatprep.subr.mxu0 0.0
        %1014 = vmatpush1.msra.mxu0 %v982
        %1015 = vmatprep.subr.mxu0 0.0
        %1016 = vmatpush1.msra.mxu0 %v981
        %1017 = vmatprep.subr.mxu0 0.0
        %1018 = vmatpush1.msra.mxu0 %v980
        %1019 = vmatprep.subr.mxu0 0.0
        %1020 = vmatpush1.msra.mxu0 %v979
        %1021 = vmatprep.subr.mxu0 0.0
        %1022 = vmatpush1.msra.mxu0 %v978
        %1023 = vmatprep.subr.mxu0 0.0
        %1024 = vmatpush1.msra.mxu0 %v977
        %1025 = vmatprep.subr.mxu0 0.0
        %1026 = vmatpush2.msra.mxu0 0.0
        %1027 = vmatprep.subr.mxu0 0.0
        %1028 = vmatpush2.msra.mxu0 0.0
        %1029 = vmatprep.subr.mxu0 0.0
        %1030 = vmatpush2.msra.mxu0 0.0
        %1031 = vmatprep.subr.mxu0 0.0
        %1032 = vmatpush2.msra.mxu0 0.0
        %1033 = vmatprep.subr.mxu0 0.0
        %1034 = vmatpush2.msra.mxu0 0.0
        %1035 = vmatprep.subr.mxu0 0.0
        %1036 = vmatpush2.msra.mxu0 0.0
        %1037 = vmatprep.subr.mxu0 0.0
        %1038 = vmatpush2.msra.mxu0 0.0
        %1039 = vmatprep.subr.mxu0 0.0
        %1040 = vmatpush2.msra.mxu0 0.0
        %1041 = vmatprep.subr.mxu0 0.0
        %1042 = vmatpush2.msra.mxu0 0.0
        %1043 = vmatprep.subr.mxu0 0.0
        %1044 = vmatpush2.msra.mxu0 0.0
        %1045 = vmatprep.subr.mxu0 0.0
        %1046 = vmatpush2.msra.mxu0 0.0
        %1047 = vmatprep.subr.mxu0 0.0
        %1048 = vmatpush2.msra.mxu0 0.0
        %1049 = vmatprep.subr.mxu0 0.0
        %1050 = vmatpush2.msra.mxu0 0.0
        %1051 = vmatprep.subr.mxu0 0.0
        %1052 = vmatpush2.msra.mxu0 0.0
        %1053 = vmatprep.subr.mxu0 0.0
        %1054 = vmatpush2.msra.mxu0 0.0
        %1055 = vmatprep.subr.mxu0 0.0
        %1056 = vmatpush2.msra.mxu0 0.0
        %1057 = vmatprep.mubr.f32.mxu0 0.0
        %1058 = vmatmul.mubr.f32.gmra.mxu0 %v976
        %v1059 = vpop.f32.mrf.mxu0
        %v1060 = vadd.f32 0.0, %v1059
        %v1061 = vpop.f32.mrf.mxu0
        %1062 = vdwg.mxu0
        %v1063 = vadd.f32 %v974, %v1060
        %s1064 = scalar_lea.vmem [#allocation2], 4
        %v1065 = vld [vmem:[%s1064] ss:$2 sm:$0xff]
        %v1066 = vld [vmem:[#allocation3 + $0x200] sm:$0xff]
        %v1067 = vld [vmem:[#allocation3 + $0x208] sm:$0xff]
        %v1068 = vld [vmem:[#allocation3 + $0x210] sm:$0xff]
        %v1069 = vld [vmem:[#allocation3 + $0x218] sm:$0xff]
        %v1070 = vld [vmem:[#allocation3 + $0x220] sm:$0xff]
        %v1071 = vld [vmem:[#allocation3 + $0x228] sm:$0xff]
        %v1072 = vld [vmem:[#allocation3 + $0x230] sm:$0xff]
        %v1073 = vld [vmem:[#allocation3 + $0x238] sm:$0xff]
        %v1074 = vld [vmem:[#allocation3 + $0x240] sm:$0xff]
        %v1075 = vld [vmem:[#allocation3 + $0x248] sm:$0xff]
        %v1076 = vld [vmem:[#allocation3 + $0x250] sm:$0xff]
        %v1077 = vld [vmem:[#allocation3 + $0x258] sm:$0xff]
        %v1078 = vld [vmem:[#allocation3 + $0x260] sm:$0xff]
        %v1079 = vld [vmem:[#allocation3 + $0x268] sm:$0xff]
        %v1080 = vld [vmem:[#allocation3 + $0x270] sm:$0xff]
        %v1081 = vld [vmem:[#allocation3 + $0x278] sm:$0xff]
        %1082 = vmatprep.subr.mxu0 0.0
        %1083 = vmatpush1.msra.mxu0 %v1081
        %1084 = vmatprep.subr.mxu0 0.0
        %1085 = vmatpush1.msra.mxu0 %v1080
        %1086 = vmatprep.subr.mxu0 0.0
        %1087 = vmatpush1.msra.mxu0 %v1079
        %1088 = vmatprep.subr.mxu0 0.0
        %1089 = vmatpush1.msra.mxu0 %v1078
        %1090 = vmatprep.subr.mxu0 0.0
        %1091 = vmatpush1.msra.mxu0 %v1077
        %1092 = vmatprep.subr.mxu0 0.0
        %1093 = vmatpush1.msra.mxu0 %v1076
        %1094 = vmatprep.subr.mxu0 0.0
        %1095 = vmatpush1.msra.mxu0 %v1075
        %1096 = vmatprep.subr.mxu0 0.0
        %1097 = vmatpush1.msra.mxu0 %v1074
        %1098 = vmatprep.subr.mxu0 0.0
        %1099 = vmatpush1.msra.mxu0 %v1073
        %1100 = vmatprep.subr.mxu0 0.0
        %1101 = vmatpush1.msra.mxu0 %v1072
        %1102 = vmatprep.subr.mxu0 0.0
        %1103 = vmatpush1.msra.mxu0 %v1071
        %1104 = vmatprep.subr.mxu0 0.0
        %1105 = vmatpush1.msra.mxu0 %v1070
        %1106 = vmatprep.subr.mxu0 0.0
        %1107 = vmatpush1.msra.mxu0 %v1069
        %1108 = vmatprep.subr.mxu0 0.0
        %1109 = vmatpush1.msra.mxu0 %v1068
        %1110 = vmatprep.subr.mxu0 0.0
        %1111 = vmatpush1.msra.mxu0 %v1067
        %1112 = vmatprep.subr.mxu0 0.0
        %1113 = vmatpush1.msra.mxu0 %v1066
        %1114 = vmatprep.subr.mxu0 0.0
        %1115 = vmatpush2.msra.mxu0 0.0
        %1116 = vmatprep.subr.mxu0 0.0
        %1117 = vmatpush2.msra.mxu0 0.0
        %1118 = vmatprep.subr.mxu0 0.0
        %1119 = vmatpush2.msra.mxu0 0.0
        %1120 = vmatprep.subr.mxu0 0.0
        %1121 = vmatpush2.msra.mxu0 0.0
        %1122 = vmatprep.subr.mxu0 0.0
        %1123 = vmatpush2.msra.mxu0 0.0
        %1124 = vmatprep.subr.mxu0 0.0
        %1125 = vmatpush2.msra.mxu0 0.0
        %1126 = vmatprep.subr.mxu0 0.0
        %1127 = vmatpush2.msra.mxu0 0.0
        %1128 = vmatprep.subr.mxu0 0.0
        %1129 = vmatpush2.msra.mxu0 0.0
        %1130 = vmatprep.subr.mxu0 0.0
        %1131 = vmatpush2.msra.mxu0 0.0
        %1132 = vmatprep.subr.mxu0 0.0
        %1133 = vmatpush2.msra.mxu0 0.0
        %1134 = vmatprep.subr.mxu0 0.0
        %1135 = vmatpush2.msra.mxu0 0.0
        %1136 = vmatprep.subr.mxu0 0.0
        %1137 = vmatpush2.msra.mxu0 0.0
        %1138 = vmatprep.subr.mxu0 0.0
        %1139 = vmatpush2.msra.mxu0 0.0
        %1140 = vmatprep.subr.mxu0 0.0
        %1141 = vmatpush2.msra.mxu0 0.0
        %1142 = vmatprep.subr.mxu0 0.0
        %1143 = vmatpush2.msra.mxu0 0.0
        %1144 = vmatprep.subr.mxu0 0.0
        %1145 = vmatpush2.msra.mxu0 0.0
        %1146 = vmatprep.mubr.f32.mxu0 0.0
        %1147 = vmatmul.mubr.f32.gmra.mxu0 %v1065
        %v1148 = vpop.f32.mrf.mxu0
        %v1149 = vadd.f32 0.0, %v1148
        %v1150 = vpop.f32.mrf.mxu0
        %1151 = vdwg.mxu0
        %v1152 = vadd.f32 %v1063, %v1149
        %1153 = vst [vmem:[%s205] sm:$0xff] %v1152
        %s1154 = sand.u32 %s116, 1
        %s1155 = scalar_lea.sflag [#allocation5], %s1154
        %s1156 = sand.u32 %s116, 1
        %s1157 = smul.addr %s1156, 8
        %s1158 = scalar_lea.vmem [#allocation6], %s1157
        // Predicated region
        $region41: #{tpu_custom_call.1} parent=35 // pred_check
          %p1159 = pneg %p126
        $region42: #{tpu_custom_call.1} parent=35 // pred_check_branch
          %1161 = sbr.rel (%p1159) target = $region44
        $region43: #{tpu_custom_call.1} parent=35 // pred_region
          %s1163 = ssub.s32 128, 128
          %1164 = vsyncadd %s1155, %s1163
          %s1165 = smul.addr %s19, 128
          %s1166 = scalar_lea.hbm %s4, %s1165
          %s1168 = sshll.u32 %s1158, 4
          %s1169 = int_to_ptr.vmem [resolvable:$true] %s1168
          %1171 = dma.vmem_to_hbm [thread:$0]  %s1169, 128, %s1166, %s1155
        $region44: #{tpu_custom_call.1} parent=35 // pred_fallthru
          _
      $region36: #{tpu_custom_call.1} parent=5 // pred_fallthru
        _
      %p1172 = scmp.le.s32.totalorder 2, %s14
      // Predicated region
      $region45: #{tpu_custom_call.1} parent=5 // pred_check
        %p1173 = pneg %p1172
      $region46: #{tpu_custom_call.1} parent=5 // pred_check_branch
        %1175 = sbr.rel (%p1173) target = $region48
      $region47: #{tpu_custom_call.1} parent=5 // pred_region
        %s1176 = ssub.s32 %s14, 2
        // Predicated region
        $region49: #{tpu_custom_call.1} parent=47 // pred_check
          %p1177 = pneg %p132
        $region50: #{tpu_custom_call.1} parent=47 // pred_check_branch
          %1179 = sbr.rel (%p1177) target = $region52
        $region51: #{tpu_custom_call.1} parent=47 // pred_region
          %s1180 = sand.u32 %s117, 1
          %s1181 = scalar_lea.sflag [#allocation5], %s1180
          %s1182 = sand.u32 %s117, 1
          %s1183 = smul.addr %s1182, 8
          %s1184 = scalar_lea.vmem [#allocation6], %s1183
          %1185 = dma.done %s1181, 128
        $region52: #{tpu_custom_call.1} parent=47 // pred_fallthru
          _
      $region48: #{tpu_custom_call.1} parent=5 // pred_fallthru
        _
    $region6: #{tpu_custom_call.1} parent=1 // loop_footer
      %s18 = sadd.s32 1, %s14
    $region7: #{tpu_custom_call.1} parent=1 // loop_footer_branch
      %13 = sbr.rel target = $region3
    $region8: #{tpu_custom_call.1} parent=1 // loop_exit
      _
    %1186 = vsyncpa [#allocation4], 1
    %s1187 = scalar_lea.sflag [#allocation4], 1
    %1188 = vsyncpa %s1187, 1
    %1189 = vsyncpa [#allocation5], 1
    %s1190 = scalar_lea.sflag [#allocation5], 1
    %1191 = vsyncpa %s1190, 1

</llo_original>
